<compile_context>
chip_gen: v6e
topology: v6e:2x2x1
jax: 0.10.0
libtpu: 0.0.40
codegen_flags: <defaults>
</compile_context>

<pallas_src>
import functools

import jax
import jax.numpy as jnp
from jax.experimental import pallas as pl
from jax.experimental.pallas import tpu as pltpu


# ----------------------------------------------------------------------------
# Kernels
# ----------------------------------------------------------------------------
def _fused_kernel(w_ref, b_ref, g_ref, x_ref, out_ref, *, inv_hw):
    # w_ref: (C, C)  = W.T (pre-transposed); b_ref: (1, C) = 2*bias
    # g_ref/x_ref/out_ref: (TB, C, HW)
    x = x_ref[...]
    fusion = g_ref[...] + x                                    # (TB, C, HW)
    sum_f = jnp.sum(fusion, axis=2)                            # (TB, C)
    max_f = jnp.max(fusion, axis=2)                            # (TB, C)
    # att_1 + att_2 = (avg + max) @ W.T + 2*b  (fused into one tiny GEMM)
    pooled = sum_f * inv_hw + max_f                            # (TB, C)
    att = jnp.dot(pooled, w_ref[...], preferred_element_type=jnp.float32)
    scale = jax.nn.sigmoid(att + b_ref[...])                   # (TB, C)
    out_ref[...] = jnp.maximum(x * scale[:, :, None], 0.0).astype(out_ref.dtype)


def _pool_kernel(w_ref, b_ref, g_ref, x_ref, scale_ref, sum_sc, max_sc, *,
                 true_hw, hw_tile):
    # Spatial-chunked reduction: grid = (B, n_hw). Accumulates sum/max of
    # (g + x) over HW chunks, finalizes the sigmoid scale on the last chunk.
    h = pl.program_id(1)

    @pl.when(h == 0)
    def _():
        sum_sc[...] = jnp.zeros_like(sum_sc)
        max_sc[...] = jnp.full_like(max_sc, -jnp.inf)

    fusion = g_ref[...] + x_ref[...]                           # (1, C, hw_tile)
    if true_hw % hw_tile != 0:
        # Last chunk is partial: mask out-of-range lanes (0 for sum, -inf max).
        lane = jax.lax.broadcasted_iota(jnp.int32, fusion.shape, 2) + h * hw_tile
        valid = lane < true_hw
        sum_sc[...] += jnp.sum(jnp.where(valid, fusion, 0.0), axis=2)
        max_sc[...] = jnp.maximum(
            max_sc[...], jnp.max(jnp.where(valid, fusion, -jnp.inf), axis=2))
    else:
        sum_sc[...] += jnp.sum(fusion, axis=2)
        max_sc[...] = jnp.maximum(max_sc[...], jnp.max(fusion, axis=2))

    @pl.when(h == pl.num_programs(1) - 1)
    def _():
        pooled = sum_sc[...] * (1.0 / true_hw) + max_sc[...]   # (1, C)
        att = jnp.dot(pooled, w_ref[...], preferred_element_type=jnp.float32)
        scale = jax.nn.sigmoid(att + b_ref[...])               # (1, C)
        scale_ref[...] = scale[:, :, None].astype(scale_ref.dtype)  # (1, C, 1)


def _apply_kernel(scale_ref, x_ref, out_ref):
    # Elementwise pass over HW chunks: out = relu(x * scale).
    out_ref[...] = jnp.maximum(x_ref[...] * scale_ref[...], 0.0).astype(out_ref.dtype)


# ----------------------------------------------------------------------------
# Wrapper
# ----------------------------------------------------------------------------
def _chip_info():
    """Return (vmem_bytes, tensorcores_per_chip) with conservative fallbacks."""
    try:
        kind = jax.devices()[0].device_kind.lower()
    except Exception:
        kind = ""
    if "v7" in kind:
        return 64 * 1024 * 1024, 2
    if "v6" in kind or "v5" in kind:
        return 128 * 1024 * 1024, 1
    if "v2" in kind or "v3" in kind:
        return 16 * 1024 * 1024, 1
    return 64 * 1024 * 1024, 1


def _pick_batch_tile(batch, tb_max, want_two_cores):
    """Largest divisor of `batch` <= tb_max; on 2-TC chips prefer an even grid."""
    divs = [d for d in range(1, batch + 1) if batch % d == 0 and d <= tb_max]
    if want_two_cores and batch >= 2:
        even_split = [d for d in divs if (batch // d) % 2 == 0]
        if even_split:
            return max(even_split)
        multi = [d for d in divs if batch // d >= 2]
        if multi:
            return max(multi)
    return max(divs)


def refinement_module(g, x, weight, bias, *, spatial_chunk=None):
    """g, x: (B, C, H, W) f32.  weight: (C, C) (PyTorch out,in).  bias: (C,).

    spatial_chunk: optional multiple of 128 forcing the spatial-tiled path
    (otherwise chosen automatically only when a whole image doesn't fit VMEM).
    """
    B, C, H, W = x.shape
    HW = H * W
    itemsize = 4  # float32

    # Free reshapes (contiguous trailing dims): no extra HBM traffic.
    g3 = g.reshape(B, C, HW)
    x3 = x.reshape(B, C, HW)
    # One-time parameter prep (outside the grid loop): W.T and 2*bias.
    w_t = weight.T.astype(jnp.float32)                   # (C, C) so pooled @ w_t == pooled @ W.T
    b2 = (2.0 * bias).reshape(1, C).astype(jnp.float32)  # folds att_1 + att_2 bias

    vmem_bytes, num_tc = _chip_info()
    budget = int(vmem_bytes * 0.6)                       # streaming working-set budget
    per_image_stream = 6 * C * HW * itemsize             # 2 bufs x (g, x, out)
    param_bytes = 2 * (C * C + 2 * C) * itemsize         # weight + bias (double-buffered, conservative)

    # ---------------- Path 1: whole images, tiled over batch ----------------
    if spatial_chunk is None and per_image_stream <= budget:
        tb_max = max(1, budget // per_image_stream)
        tb = _pick_batch_tile(B, min(tb_max, B), num_tc >= 2)
        grid_b = B // tb
        vmem_limit = max(16 << 20,
                         min(tb * per_image_stream + param_bytes + (8 << 20),
                             int(vmem_bytes * 0.85)))

        kernel = functools.partial(_fused_kernel, inv_hw=1.0 / HW)
        cost = pl.CostEstimate(
            flops=5 * B * C * HW + 2 * B * C * C,
            transcendentals=B * C,
            bytes_accessed=3 * B * C * HW * itemsize + (C * C + C) * itemsize,
        )
        out3 = pl.pallas_call(
            kernel,
            out_shape=jax.ShapeDtypeStruct((B, C, HW), x.dtype),
            grid_spec=pltpu.PrefetchScalarGridSpec(
                num_scalar_prefetch=0,
                grid=(grid_b,),
                in_specs=[
                    pl.BlockSpec((C, C), lambda b: (0, 0)),           # W.T (resident)
                    pl.BlockSpec((1, C), lambda b: (0, 0)),           # 2*bias (lane-dense)
                    pl.BlockSpec((tb, C, HW), lambda b: (b, 0, 0)),   # g tile
                    pl.BlockSpec((tb, C, HW), lambda b: (b, 0, 0)),   # x tile
                ],
                out_specs=pl.BlockSpec((tb, C, HW), lambda b: (b, 0, 0)),
            ),
            compiler_params=pltpu.CompilerParams(
                dimension_semantics=("parallel",),
                vmem_limit_bytes=vmem_limit,
            ),
            cost_estimate=cost,
        )(w_t, b2, g3, x3)
        return out3.reshape(B, C, H, W)

    # ------------- Path 2: large images -> tile the spatial axis -------------
    if spatial_chunk is not None:
        hw_tile = int(spatial_chunk)
    else:
        hw_tile = (budget // (6 * C * itemsize)) // 128 * 128
        hw_tile = max(hw_tile, 128)
    hw_tile = min(hw_tile, ((HW + 127) // 128) * 128)
    n_hw = pl.cdiv(HW, hw_tile)

    stream_bytes = 4 * C * hw_tile * itemsize            # 2 bufs x 2 streams per kernel
    vmem_limit = max(16 << 20,
                     min(stream_bytes + param_bytes + (8 << 20),
                         int(vmem_bytes * 0.85)))

    pool_kernel = functools.partial(_pool_kernel, true_hw=HW, hw_tile=hw_tile)
    scale = pl.pallas_call(
        pool_kernel,
        out_shape=jax.ShapeDtypeStruct((B, C, 1), jnp.float32),
        grid_spec=pltpu.PrefetchScalarGridSpec(
            num_scalar_prefetch=0,
            grid=(B, n_hw),
            in_specs=[
                pl.BlockSpec((C, C), lambda b, h: (0, 0)),
                pl.BlockSpec((1, C), lambda b, h: (0, 0)),
                pl.BlockSpec((1, C, hw_tile), lambda b, h: (b, 0, h)),
                pl.BlockSpec((1, C, hw_tile), lambda b, h: (b, 0, h)),
            ],
            out_specs=pl.BlockSpec((1, C, 1), lambda b, h: (b, 0, 0)),
            scratch_shapes=[pltpu.VMEM((1, C), jnp.float32),   # running sum
                            pltpu.VMEM((1, C), jnp.float32)],  # running max
        ),
        compiler_params=pltpu.CompilerParams(
            dimension_semantics=("parallel", "arbitrary"),
            vmem_limit_bytes=vmem_limit,
        ),
    )(w_t, b2, g3, x3)

    out3 = pl.pallas_call(
        _apply_kernel,
        out_shape=jax.ShapeDtypeStruct((B, C, HW), x.dtype),
        grid_spec=pltpu.PrefetchScalarGridSpec(
            num_scalar_prefetch=0,
            grid=(B, n_hw),
            in_specs=[
                pl.BlockSpec((1, C, 1), lambda b, h: (b, 0, 0)),        # scale (resident per image)
                pl.BlockSpec((1, C, hw_tile), lambda b, h: (b, 0, h)),  # x chunk
            ],
            out_specs=pl.BlockSpec((1, C, hw_tile), lambda b, h: (b, 0, h)),
        ),
        compiler_params=pltpu.CompilerParams(
            dimension_semantics=("parallel", "parallel"),
            vmem_limit_bytes=vmem_limit,
        ),
    )(scale, x3)
    return out3.reshape(B, C, H, W)


# ----------------------------------------------------------------------------
# Reference & test
# ----------------------------------------------------------------------------
def _reference(g, x, weight, bias):
    """Pure-JAX reference mirroring the PyTorch forward."""
    fusion = g + x
    avg = jnp.mean(fusion, axis=(2, 3))          # (B, C)
    mx = jnp.max(fusion, axis=(2, 3))            # (B, C)
    att_1 = avg @ weight.T + bias
    att_2 = mx @ weight.T + bias
    scale = jax.nn.sigmoid(att_1 + att_2)[:, :, None, None]
    return jnp.maximum(x * scale, 0.0)


def _make_inputs(key, B, C, H, W):
    kg, kx, kw, kb = jax.random.split(key, 4)
    g = jax.random.normal(kg, (B, C, H, W), dtype=jnp.float32)
    x = jax.random.normal(kx, (B, C, H, W), dtype=jnp.float32)
    bound = 1.0 / jnp.sqrt(jnp.float32(C))
    weight = jax.random.uniform(kw, (C, C), minval=-bound, maxval=bound,
                                dtype=jnp.float32)
    bias = jax.random.uniform(kb, (C,), minval=-bound, maxval=bound,
                              dtype=jnp.float32)
    return g, x, weight, bias


if __name__ == "__main__":
    key = jax.random.PRNGKey(0)
    k1, k2 = jax.random.split(key)

    # Test 1: small case -> fused single-kernel batch-tiled path.
    B, C, H, W = 2, 4, 16, 16
    g, x, weight, bias = _make_inputs(k1, B, C, H, W)
    out = jax.block_until_ready(refinement_module(g, x, weight, bias))
    ref = _reference(g, x, weight, bias)
    assert out.shape == (B, C, H, W)
    assert jnp.allclose(out, ref, atol=1e-5, rtol=1e-5), "path-1 mismatch"

    # Test 2: force the spatial-chunked (two-kernel) large-image path, with a
    # partial last HW chunk (H*W = 400 split into chunks of 256).
    B2, C2, H2, W2 = 3, 8, 20, 20
    g2, x2, w2, b2 = _make_inputs(k2, B2, C2, H2, W2)
    out2 = jax.block_until_ready(
        refinement_module(g2, x2, w2, b2, spatial_chunk=256))
    ref2 = _reference(g2, x2, w2, b2)
    assert out2.shape == (B2, C2, H2, W2)
    assert jnp.allclose(out2, ref2, atol=1e-5, rtol=1e-5), "path-2 mismatch"

    print("KERNEL_OK")
</pallas_src>

<mosaic_0001>
module attributes {stable_mosaic.version = 11 : i64} {
  func.func @_fused_kernel(%arg0: i32, %arg1: memref<4x4xf32, #tpu.memory_space<vmem>>, %arg2: memref<1x4xf32, #tpu.memory_space<vmem>>, %arg3: memref<2x4x256xf32, #tpu.memory_space<vmem>>, %arg4: memref<2x4x256xf32, #tpu.memory_space<vmem>>, %arg5: memref<2x4x256xf32, #tpu.memory_space<vmem>>) attributes {dimension_semantics = [#tpu.dimension_semantics<parallel>], iteration_bounds = array<i64: 1>, scalar_prefetch = 0 : i64, scratch_operands = 0 : i64, tpu.core_type = #tpu.core_type<tc>, window_params = [{pipeline_mode = #tpu.pipeline_mode<synchronous>, transform_indices = @transform_0, window_bounds = array<i64: 4, 4>}, {pipeline_mode = #tpu.pipeline_mode<synchronous>, transform_indices = @transform_1, window_bounds = array<i64: 1, 4>}, {transform_indices = @transform_2, window_bounds = array<i64: 2, 4, 256>}, {transform_indices = @transform_3, window_bounds = array<i64: 2, 4, 256>}, {transform_indices = @transform_4, window_bounds = array<i64: 2, 4, 256>}]} {
    %c0 = arith.constant 0 : index
    %c0_0 = arith.constant 0 : index
    %c0_1 = arith.constant 0 : index
    %0 = vector.load %arg4[%c0, %c0_0, %c0_1] : memref<2x4x256xf32, #tpu.memory_space<vmem>>, vector<2x4x256xf32>
    %c0_2 = arith.constant 0 : index
    %c0_3 = arith.constant 0 : index
    %c0_4 = arith.constant 0 : index
    %1 = vector.load %arg3[%c0_2, %c0_3, %c0_4] : memref<2x4x256xf32, #tpu.memory_space<vmem>>, vector<2x4x256xf32>
    %2 = arith.addf %1, %0 : vector<2x4x256xf32>
    %cst = arith.constant dense<0.000000e+00> : vector<2x4xf32>
    %3 = vector.multi_reduction <add>, %2, %cst [2] : vector<2x4x256xf32> to vector<2x4xf32>
    %cst_5 = arith.constant dense<0xFF800000> : vector<2x4xf32>
    %4 = vector.multi_reduction <maximumf>, %2, %cst_5 [2] : vector<2x4x256xf32> to vector<2x4xf32>
    %cst_6 = arith.constant 3.906250e-03 : f32
    %5 = vector.broadcast %cst_6 : f32 to vector<2x4xf32>
    %6 = arith.mulf %3, %5 : vector<2x4xf32>
    %7 = arith.addf %6, %4 : vector<2x4xf32>
    %c0_7 = arith.constant 0 : index
    %c0_8 = arith.constant 0 : index
    %8 = vector.load %arg1[%c0_7, %c0_8] : memref<4x4xf32, #tpu.memory_space<vmem>>, vector<4x4xf32>
    %cst_9 = arith.constant dense<0.000000e+00> : vector<2x4xf32>
    %9 = tpu.matmul %7, %8, %cst_9 {dimension_numbers = #tpu.dot_dimension_numbers<[1], [0], [0], [1], [0, 0, 1, 1], [], []>} : vector<2x4xf32>, vector<4x4xf32>, vector<2x4xf32> -> vector<2x4xf32>
    %c0_10 = arith.constant 0 : index
    %c0_11 = arith.constant 0 : index
    %10 = vector.load %arg2[%c0_10, %c0_11] : memref<1x4xf32, #tpu.memory_space<vmem>>, vector<1x4xf32>
    %11 = vector.broadcast %10 : vector<1x4xf32> to vector<2x4xf32>
    %12 = arith.addf %9, %11 : vector<2x4xf32>
    %13 = arith.negf %12 : vector<2x4xf32>
    %14 = math.exp %13 : vector<2x4xf32>
    %cst_12 = arith.constant 1.000000e+00 : f32
    %15 = vector.broadcast %cst_12 : f32 to vector<2x4xf32>
    %16 = arith.addf %15, %14 : vector<2x4xf32>
    %17 = arith.divf %15, %16 : vector<2x4xf32>
    %18 = vector.shape_cast %17 : vector<2x4xf32> to vector<2x4x1xf32>
    %19 = vector.broadcast %18 : vector<2x4x1xf32> to vector<2x4x256xf32>
    %20 = arith.mulf %0, %19 : vector<2x4x256xf32>
    %cst_13 = arith.constant 0.000000e+00 : f32
    %21 = vector.broadcast %cst_13 : f32 to vector<2x4x256xf32>
    %22 = arith.maximumf %20, %21 : vector<2x4x256xf32>
    %c0_14 = arith.constant 0 : index
    %c0_15 = arith.constant 0 : index
    %c0_16 = arith.constant 0 : index
    %23 = vector.load %arg5[%c0_14, %c0_15, %c0_16] : memref<2x4x256xf32, #tpu.memory_space<vmem>>, vector<2x4x256xf32>
    tpu.vector_store %arg5[%c0_14, %c0_15, %c0_16], %22 {strides = array<i32>} : memref<2x4x256xf32, #tpu.memory_space<vmem>>, vector<2x4x256xf32>,
    return
  }
  func.func @transform_0(%arg0: i32) -> (i32, i32) {
    %c0_i32 = arith.constant 0 : i32
    %c0_i32_0 = arith.constant 0 : i32
    %c0_i32_1 = arith.constant 0 : i32
    return %c0_i32, %c0_i32_0 : i32, i32
  }
  func.func @transform_1(%arg0: i32) -> (i32, i32) {
    %c0_i32 = arith.constant 0 : i32
    %c0_i32_0 = arith.constant 0 : i32
    %c0_i32_1 = arith.constant 0 : i32
    return %c0_i32, %c0_i32_0 : i32, i32
  }
  func.func @transform_2(%arg0: i32) -> (i32, i32, i32) {
    %c0_i32 = arith.constant 0 : i32
    %c0_i32_0 = arith.constant 0 : i32
    %c0_i32_1 = arith.constant 0 : i32
    return %arg0, %c0_i32, %c0_i32_0 : i32, i32, i32
  }
  func.func @transform_3(%arg0: i32) -> (i32, i32, i32) {
    %c0_i32 = arith.constant 0 : i32
    %c0_i32_0 = arith.constant 0 : i32
    %c0_i32_1 = arith.constant 0 : i32
    return %arg0, %c0_i32, %c0_i32_0 : i32, i32, i32
  }
  func.func @transform_4(%arg0: i32) -> (i32, i32, i32) {
    %c0_i32 = arith.constant 0 : i32
    %c0_i32_0 = arith.constant 0 : i32
    %c0_i32_1 = arith.constant 0 : i32
    return %arg0, %c0_i32, %c0_i32_0 : i32, i32, i32
  }
}

</mosaic_0001>

<llo_original>
// kernel: tpu_custom_call.1
$region0: #{tpu_custom_call.1}
  #allocation0 [shape = 'u32[]', space=smem, size = 0x4, offset = 0x4, fixed_abs, tag = 'smem constant byte address 0x4 - core index']
  #allocation1 [shape = 'u32[144,128]{1,0:T(1,128)}', space=vmem, size = 0x12000, scoped, tag = 'internal scratch']
  %s0 = inlined_call_operand.hbm [shape: f32[4,4], index: 0, kind: input, shape index: {}]
  %s1 = inlined_call_operand.vmem [shape: f32[1,4], index: 1, kind: input, shape index: {}]
  %s2 = inlined_call_operand.hbm [shape: f32[2,4,256], index: 2, kind: input, shape index: {}]
  %s3 = inlined_call_operand.hbm [shape: f32[2,4,256], index: 3, kind: input, shape index: {}]
  %s4 = inlined_call_operand.hbm [shape: f32[2,4,256], index: 4, kind: output, shape index: {}]
  %s5 = sld [smem:[#allocation0]]
  $region38: #{tpu_custom_call.1} parent=0
    _
  %s7 = ssub.s32 1, %s5
  %s8 = scalar_select 0, %s7, %s5
  $region1: #{tpu_custom_call.1} parent=0
    #allocation2 [shape = 'u8[2048]{0}', space=vmem, size = 0x800, scoped, tag = 'input window, operand 0, single buffered']
    #allocation3 [shape = 's32[1]{0}', space=sflag, size = 0x4, scoped, tag = 'scoped memory for tpu_custom_call.1']
    #allocation4 [shape = 's32[1]{0}', space=sflag, size = 0x4, scoped, tag = 'scoped memory for tpu_custom_call.1']
    #allocation5 [shape = 'u8[8192]{0}', space=vmem, size = 0x2000, scoped, tag = 'input window, operand 2, single buffered']
    #allocation6 [shape = 's32[1]{0}', space=sflag, size = 0x4, scoped, tag = 'scoped memory for tpu_custom_call.1']
    #allocation7 [shape = 'u8[8192]{0}', space=vmem, size = 0x2000, scoped, tag = 'input window, operand 3, single buffered']
    #allocation8 [shape = 'u8[8192]{0}', space=vmem, size = 0x2000, scoped, tag = 'output window, operand 0, single buffered']
    %9 = vsyncpa [#allocation3], 0
    %10 = vsyncpa [#allocation6], 0
    %11 = vsyncpa [#allocation4], 0
    // Predicated region
    $region2: #{tpu_custom_call.1} parent=1 // pred_check
      _
    $region3: #{tpu_custom_call.1} parent=1 // pred_check_branch
      %13 = sbr.rel (0) target = $region5
    $region4: #{tpu_custom_call.1} parent=1 // pred_region
      %s15 = ssub.s32 64, 64
      %16 = vsyncadd [#allocation3], %s15
      %s18 = sshll.u32 [#allocation2], 4
      %s19 = int_to_ptr.vmem [resolvable:$true] %s18
      %21 = dma.hbm_to_vmem [thread:$0]  %s0, 64, %s19, [#allocation3]
    $region5: #{tpu_custom_call.1} parent=1 // pred_fallthru
      _
    // Predicated region
    $region6: #{tpu_custom_call.1} parent=1 // pred_check
      _
    $region7: #{tpu_custom_call.1} parent=1 // pred_check_branch
      %23 = sbr.rel (0) target = $region9
    $region8: #{tpu_custom_call.1} parent=1 // pred_region
      _
    $region9: #{tpu_custom_call.1} parent=1 // pred_fallthru
      _
    // Predicated region
    $region10: #{tpu_custom_call.1} parent=1 // pred_check
      _
    $region11: #{tpu_custom_call.1} parent=1 // pred_check_branch
      %25 = sbr.rel (0) target = $region13
    $region12: #{tpu_custom_call.1} parent=1 // pred_region
      %s27 = ssub.s32 256, 256
      %28 = vsyncadd [#allocation6], %s27
      %s29 = sshll.u32 [#allocation5], 4
      %s30 = int_to_ptr.vmem [resolvable:$true] %s29
      %35 = dma.hbm_to_vmem [thread:$0]  %s2, 256, %s30, [#allocation6], 128, 128, 8
    $region13: #{tpu_custom_call.1} parent=1 // pred_fallthru
      _
    // Predicated region
    $region14: #{tpu_custom_call.1} parent=1 // pred_check
      _
    $region15: #{tpu_custom_call.1} parent=1 // pred_check_branch
      %37 = sbr.rel (0) target = $region17
    $region16: #{tpu_custom_call.1} parent=1 // pred_region
      %s39 = ssub.s32 256, 256
      %40 = vsyncadd [#allocation6], %s39
      %s41 = sshll.u32 [#allocation7], 4
      %s42 = int_to_ptr.vmem [resolvable:$true] %s41
      %47 = dma.hbm_to_vmem [thread:$0]  %s3, 256, %s42, [#allocation6], 128, 128, 8
    $region17: #{tpu_custom_call.1} parent=1 // pred_fallthru
      _
    // Predicated region
    $region18: #{tpu_custom_call.1} parent=1 // pred_check
      _
    $region19: #{tpu_custom_call.1} parent=1 // pred_check_branch
      %49 = sbr.rel (0) target = $region21
    $region20: #{tpu_custom_call.1} parent=1 // pred_region
      %50 = dma.done [#allocation3], 64
    $region21: #{tpu_custom_call.1} parent=1 // pred_fallthru
      _
    // Predicated region
    $region22: #{tpu_custom_call.1} parent=1 // pred_check
      _
    $region23: #{tpu_custom_call.1} parent=1 // pred_check_branch
      %52 = sbr.rel (0) target = $region25
    $region24: #{tpu_custom_call.1} parent=1 // pred_region
      %53 = dma.done [#allocation6], 256
    $region25: #{tpu_custom_call.1} parent=1 // pred_fallthru
      _
    // Predicated region
    $region26: #{tpu_custom_call.1} parent=1 // pred_check
      _
    $region27: #{tpu_custom_call.1} parent=1 // pred_check_branch
      %55 = sbr.rel (0) target = $region29
    $region28: #{tpu_custom_call.1} parent=1 // pred_region
      %56 = dma.done [#allocation6], 256
    $region29: #{tpu_custom_call.1} parent=1 // pred_fallthru
      _
    %v57 = vld [vmem:[#allocation7] sm:$0xff]
    %v58 = vld [vmem:[#allocation7 + $0x8] sm:$0xff]
    %v59 = vld [vmem:[#allocation5] sm:$0xff]
    %v60 = vld [vmem:[#allocation5 + $0x8] sm:$0xff]
    %v61 = vadd.f32 %v59, %v57
    %v62 = vadd.f32 %v60, %v58
    %v65 = vcombine.high %v61, %v61
    %v66 = vcombine.high %v62, %v62
    %vm69 = vcmask 1043456
    %v70 = vsel %vm69, %v61, 0.0
    %v71 = vsel %vm69, %v65, 0.0
    %v72 = vadd.f32 %v70, %v71
    %73 = vadd.xlane.f32.xlu0 %v72
    %v74 = vpop.xlane.xlu0 %73
    %v75 = vsel %vm69, %v62, 0.0
    %v76 = vsel %vm69, %v66, 0.0
    %v77 = vadd.f32 %v75, %v76
    %78 = vadd.xlane.f32.xlu0 %v77
    %v79 = vpop.xlane.xlu0 %78
    %v80 = vsel %vm69, %v61, -inf
    %v81 = vsel %vm69, %v65, -inf
    %v82 = vmax.f32 %v80, %v81
    %83 = vmax.xlane.f32.xlu0 %v82
    %v84 = vpop.xlane.xlu0 %83
    %v85 = vsel %vm69, %v62, -inf
    %v86 = vsel %vm69, %v66, -inf
    %v87 = vmax.f32 %v85, %v86
    %88 = vmax.xlane.f32.xlu0 %v87
    %v89 = vpop.xlane.xlu0 %88
    %v90 = vmul.f32 %v74, 0.00390625
    %v91 = vmul.f32 %v79, 0.00390625
    %v92 = vadd.f32 %v90, %v84
    %v93 = vadd.f32 %v91, %v89
    %v94 = vld [vmem:[#allocation2] sm:$0xf]
    %v95 = vld [vmem:[%s1] sm:$0x1]
    %v97 = vlaneseq
    %v98 = vshrl.u32 %v97, 7
    %v99 = vsub.s32 0, %v98
    %v100 = vrot.slane %v95, %v99
    %v104 = vlaneseq
    %v105 = vand.u32 %v104, 127
    %v106 = vlaneseq
    %v107 = vshrl.u32 %v106, 7
    %v108 = vsub.s32 %v105, %v107
    %v109 = vrot.slane %v92, %v108
    %v110 = vlaneseq
    %v111 = vshrl.u32 %v110, 7
    %v112 = vsub.s32 %v105, %v111
    %v113 = vrot.slane %v93, %v112
    %vm114 = vcmask 1041409
    %v115 = vsel %vm114, %v113, %v109
    %vm116 = vcmask 31744
    %v117 = vsel %vm116, %v115, 0
    %v120 = vsel %vm69, %v94, 0
    %122 = vmatprep.subr.mxu0 0.0
    %123 = vmatpush1.msra.mxu0 0.0
    %124 = vmatprep.subr.mxu0 0.0
    %125 = vmatpush1.msra.mxu0 0.0
    %126 = vmatprep.subr.mxu0 0.0
    %127 = vmatpush1.msra.mxu0 0.0
    %128 = vmatprep.subr.mxu0 0.0
    %129 = vmatpush1.msra.mxu0 0.0
    %130 = vmatprep.subr.mxu0 0.0
    %131 = vmatpush1.msra.mxu0 0.0
    %132 = vmatprep.subr.mxu0 0.0
    %133 = vmatpush1.msra.mxu0 0.0
    %134 = vmatprep.subr.mxu0 0.0
    %135 = vmatpush1.msra.mxu0 0.0
    %136 = vmatprep.subr.mxu0 0.0
    %137 = vmatpush1.msra.mxu0 0.0
    %138 = vmatprep.subr.mxu0 0.0
    %139 = vmatpush1.msra.mxu0 0.0
    %140 = vmatprep.subr.mxu0 0.0
    %141 = vmatpush1.msra.mxu0 0.0
    %142 = vmatprep.subr.mxu0 0.0
    %143 = vmatpush1.msra.mxu0 0.0
    %144 = vmatprep.subr.mxu0 0.0
    %145 = vmatpush1.msra.mxu0 0.0
    %146 = vmatprep.subr.mxu0 0.0
    %147 = vmatpush1.msra.mxu0 0.0
    %148 = vmatprep.subr.mxu0 0.0
    %149 = vmatpush1.msra.mxu0 0.0
    %150 = vmatprep.subr.mxu0 0.0
    %151 = vmatpush1.msra.mxu0 0.0
    %152 = vmatprep.subr.mxu0 0.0
    %153 = vmatpush1.msra.mxu0 %v120
    %154 = vmatprep.subr.mxu0 0.0
    %155 = vmatpush2.msra.mxu0 0.0
    %156 = vmatprep.subr.mxu0 0.0
    %157 = vmatpush2.msra.mxu0 0.0
    %158 = vmatprep.subr.mxu0 0.0
    %159 = vmatpush2.msra.mxu0 0.0
    %160 = vmatprep.subr.mxu0 0.0
    %161 = vmatpush2.msra.mxu0 0.0
    %162 = vmatprep.subr.mxu0 0.0
    %163 = vmatpush2.msra.mxu0 0.0
    %164 = vmatprep.subr.mxu0 0.0
    %165 = vmatpush2.msra.mxu0 0.0
    %166 = vmatprep.subr.mxu0 0.0
    %167 = vmatpush2.msra.mxu0 0.0
    %168 = vmatprep.subr.mxu0 0.0
    %169 = vmatpush2.msra.mxu0 0.0
    %170 = vmatprep.subr.mxu0 0.0
    %171 = vmatpush2.msra.mxu0 0.0
    %172 = vmatprep.subr.mxu0 0.0
    %173 = vmatpush2.msra.mxu0 0.0
    %174 = vmatprep.subr.mxu0 0.0
    %175 = vmatpush2.msra.mxu0 0.0
    %176 = vmatprep.subr.mxu0 0.0
    %177 = vmatpush2.msra.mxu0 0.0
    %178 = vmatprep.subr.mxu0 0.0
    %179 = vmatpush2.msra.mxu0 0.0
    %180 = vmatprep.subr.mxu0 0.0
    %181 = vmatpush2.msra.mxu0 0.0
    %182 = vmatprep.subr.mxu0 0.0
    %183 = vmatpush2.msra.mxu0 0.0
    %184 = vmatprep.subr.mxu0 0.0
    %185 = vmatpush2.msra.mxu0 0.0
    %186 = vmatprep.mubr.f32.mxu0 0.0
    %187 = vmatmul.mubr.f32.gmra.mxu0 %v117
    %v188 = vpop.f32.mrf.mxu0
    %v189 = vadd.f32 %v100, %v188
    %v190 = vpop.f32.mrf.mxu0
    %191 = vdwg.mxu0
    %v192 = vxor.u32 %v189, 2147483648
    %v193 = vmul.f32 %v192, 1.442695
    %v194 = vpow.pop %v193
    %v195 = vadd.f32 %v194, 1.0
    %v196 = vrcp.pop %v195
    %v197 = vmul.f32 1.0, %v196
    %v198 = vlaneseq
    %v199 = vshrl.u32 %v198, 7
    %v200 = vsub.s32 0, %v199
    %v201 = vrot.slane %v197, %v200
    %203 = vbcast.lane.b32.xlu0 %v201, 256
    %v204 = vpop.permute.xlu0 %203
    %v205 = vlaneseq
    %v206 = vshrl.u32 %v205, 7
    %v207 = vsub.s32 1, %v206
    %v208 = vrot.slane %v197, %v207
    %210 = vbcast.lane.b32.xlu0 %v208, 256
    %v211 = vpop.permute.xlu0 %210
    %v215 = vunpack.c.l.s4 839922192
    %v216 = vunpack.c.0.s8 %v215
    %v217 = vlaneseq
    %v218 = vshrl.u32 %v217, 7
    %v219 = vsub.s32 %v216, %v218
    %v220 = vrot.slane %v204, %v219
    %v222 = vunpack.c.l.s4 839922192
    %v223 = vunpack.c.0.s8 %v222
    %v224 = vlaneseq
    %v225 = vshrl.u32 %v224, 7
    %v226 = vsub.s32 %v223, %v225
    %v227 = vrot.slane %v211, %v226
    %v230 = vmul.f32 %v57, %v220
    %v231 = vmul.f32 %v58, %v227
    %v232 = vmax.f32 %v230, 0.0
    %v233 = vmax.f32 %v231, 0.0
    %234 = vst [vmem:[#allocation8] sm:$0xff] %v232
    %235 = vst [vmem:[#allocation8 + $0x8] sm:$0xff] %v233
    // Predicated region
    $region30: #{tpu_custom_call.1} parent=1 // pred_check
      _
    $region31: #{tpu_custom_call.1} parent=1 // pred_check_branch
      %237 = sbr.rel (0) target = $region33
    $region32: #{tpu_custom_call.1} parent=1 // pred_region
      %s239 = ssub.s32 256, 256
      %240 = vsyncadd [#allocation4], %s239
      %s241 = sshll.u32 [#allocation8], 4
      %s242 = int_to_ptr.vmem [resolvable:$true] %s241
      %247 = dma.vmem_to_hbm [thread:$0]  %s242, 256, %s4, [#allocation4], 128, 128, 8
    $region33: #{tpu_custom_call.1} parent=1 // pred_fallthru
      _
    // Predicated region
    $region34: #{tpu_custom_call.1} parent=1 // pred_check
      _
    $region35: #{tpu_custom_call.1} parent=1 // pred_check_branch
      %249 = sbr.rel (0) target = $region37
    $region36: #{tpu_custom_call.1} parent=1 // pred_region
      %250 = dma.done [#allocation4], 256
    $region37: #{tpu_custom_call.1} parent=1 // pred_fallthru
      _
    %251 = vsyncpa [#allocation3], 1
    %252 = vsyncpa [#allocation6], 1
    %253 = vsyncpa [#allocation4], 1

</llo_original>
